<compile_context>
chip_gen: v5e
topology: v5e:2x2
jax: 0.10.0
libtpu: 0.0.40
codegen_flags: <defaults>
</compile_context>

<pallas_src>
import jax
import jax.numpy as jnp
import numpy as np
from jax.experimental import pallas as pl
from jax.experimental.pallas import tpu as pltpu

N, H, W, C = 2, 16, 16, 64        # batch, height, width, gate_channels (NHWC)
RED = 16                          # reduction_ratio
CH = C // RED                     # MLP hidden width = 4
HW2 = (H * W) // 2                # 128 packed rows per image
C2 = 2 * C                        # 128 lanes per packed row
assert CH >= 1 and (H * W) % 2 == 0 and C2 == 128

# Reference-only precision (the Pallas kernel contains no matmuls at all).
PREC = jax.lax.Precision.HIGHEST


def _multi_tensorcore_chip():
    """True on chips with 2 TensorCores per device (v4 / v5p / v7x)."""
    try:
        kind = jax.devices()[0].device_kind.lower()
    except Exception:
        return False
    if "v7" in kind or "v4" in kind:
        return True
    if "v5" in kind and "lite" not in kind and "v5e" not in kind:
        return True                                   # v5p
    return False


_MULTI_TC = _multi_tensorcore_chip()


# --------------------------------------------------------------------------- #
# Fused ChannelGate kernel:  pool (avg & max) -> shared MLP -> sigmoid -> scale #
# --------------------------------------------------------------------------- #
def _channel_gate_kernel(x_ref, w1t_ref, b1_ref, w2_ref, b2x2_ref, out_ref):
    # x_ref / out_ref: (B, HW2, 2C) lane-dense VMEM tiles; B is 1 or N (static).
    # w1t_ref: (CH, C) = first Linear weight transposed so C sits on lanes.
    # b1_ref:  (CH,) f32 in SMEM (scalar reads).
    # w2_ref:  (CH, C);  b2x2_ref: (1, C) holding 2 * b2 (pre-doubled in wrapper).
    inv_hw = 1.0 / float(H * W)
    for b in range(x_ref.shape[0]):                   # static unroll: 1 or N images
        m = x_ref[b]                                  # (128, 128), fully lane-dense

        # Global spatial pooling: sublane reductions, then fold the 2 lane halves
        # (both halves carry the same 64 channels, for even / odd positions).
        s = jnp.sum(m, axis=0, keepdims=True)         # (1, 2C)
        avg = (s[:, :C] + s[:, C:]) * inv_hw          # (1, C)
        mr = jnp.max(m, axis=0, keepdims=True)        # (1, 2C)
        mx = jnp.maximum(mr[:, :C], mr[:, C:])        # (1, C)
        p = jnp.concatenate([avg, mx], axis=0)        # (2, C): both pool paths

        # Shared MLP evaluated once for both pooled rows, exactly in f32 on VPU/XLU:
        #   att = (relu(avg@w1 + b1) + relu(mx@w1 + b1)) @ w2 + 2*b2
        att = b2x2_ref[...]                           # (1, C), bias already doubled
        for j in range(CH):                           # CH = 4, fully unrolled
            hj = jnp.sum(p * w1t_ref[j:j + 1, :], axis=1, keepdims=True)  # (2, 1)
            hj = jnp.maximum(hj + b1_ref[j], 0.0)                          # ReLU
            hsj = hj[0:1, :] + hj[1:2, :]                                  # (1, 1)
            att = att + hsj * w2_ref[j:j + 1, :]                           # (1, C)

        # Numerically stable sigmoid: sigma(x) = e^-|x|/(1+e^-|x|) for x<0.
        z = jnp.exp(-jnp.abs(att))
        sig = jnp.where(att >= 0.0, 1.0 / (1.0 + z), z / (1.0 + z))        # (1, C)
        scale = jnp.concatenate([sig, sig], axis=1)                        # (1, 2C)

        # Per-channel rescale: lane-aligned broadcast, unmasked 128-lane stores.
        out_ref[b] = m * scale


def channel_gate(x, w1, b1, w2, b2):
    """x: (N, H, W, C) NHWC; w1: (C, CH); b1: (CH,); w2: (CH, C); b2: (C,)."""
    xp = x.reshape(N, HW2, C2)            # free row-major repack -> 128 lanes dense

    if _MULTI_TC:
        grid = (N,)                       # one image per TensorCore (megacore)
        blk = (1, HW2, C2)
        xmap = lambda n: (n, 0, 0)
    else:
        grid = (1,)                       # single TC: one step, whole slab
        blk = (N, HW2, C2)
        xmap = lambda n: (0, 0, 0)

    out = pl.pallas_call(
        _channel_gate_kernel,
        out_shape=jax.ShapeDtypeStruct((N, HW2, C2), jnp.float32),
        grid=grid,
        in_specs=[
            pl.BlockSpec(blk, xmap),                                   # activations
            pl.BlockSpec((CH, C), lambda n: (0, 0)),                   # w1^T
            pl.BlockSpec(memory_space=pltpu.MemorySpace.SMEM),         # b1 scalars
            pl.BlockSpec((CH, C), lambda n: (0, 0)),                   # w2
            pl.BlockSpec((1, C), lambda n: (0, 0)),                    # 2*b2
        ],
        out_specs=pl.BlockSpec(blk, xmap),
        compiler_params=pltpu.CompilerParams(dimension_semantics=("parallel",)),
    )(xp, w1.T, b1, w2, 2.0 * b2.reshape(1, C))

    return out.reshape(N, H, W, C)


@jax.jit
def channel_gate_forward(x, params):
    return channel_gate(x, params["mlp_w1"], params["mlp_b1"],
                        params["mlp_w2"], params["mlp_b2"])


# Pure-JAX reference (same math, full f32 precision) used only for correctness.
def ref_forward(x, p):
    avg = x.mean(axis=(1, 2))                                # (N, C)
    mx = x.max(axis=(1, 2))                                  # (N, C)
    mlp = lambda v: jnp.dot(
        jax.nn.relu(jnp.dot(v, p["mlp_w1"], precision=PREC) + p["mlp_b1"]),
        p["mlp_w2"], precision=PREC) + p["mlp_b2"]
    att = mlp(avg) + mlp(mx)                                 # (N, C)
    return x * jax.nn.sigmoid(att)[:, None, None, :]


if __name__ == "__main__":
    key = jax.random.PRNGKey(0)
    ks = jax.random.split(key, 5)
    # nn.Linear weights stored as (in, out) so reference math is v @ w + b.
    params = {
        "mlp_w1": jax.random.normal(ks[0], (C, CH), jnp.float32) * 0.1,
        "mlp_b1": jax.random.normal(ks[1], (CH,), jnp.float32) * 0.1,
        "mlp_w2": jax.random.normal(ks[2], (CH, C), jnp.float32) * 0.1,
        "mlp_b2": jax.random.normal(ks[3], (C,), jnp.float32) * 0.1,
    }
    # NHWC input; equivalent PyTorch NCHW shape is (2, 64, 16, 16).
    x = jax.random.normal(ks[4], (N, H, W, C), jnp.float32)

    out = jax.block_until_ready(channel_gate_forward(x, params))
    ref = jax.block_until_ready(ref_forward(x, params))

    assert out.shape == (N, H, W, C) and out.dtype == jnp.float32
    np.testing.assert_allclose(np.asarray(out), np.asarray(ref), atol=1e-3, rtol=1e-3)
    print("KERNEL_OK")
</pallas_src>

<mosaic_0001>
module attributes {stable_mosaic.version = 11 : i64} {
  func.func @_channel_gate_kernel(%arg0: i32, %arg1: memref<2x128x128xf32, #tpu.memory_space<vmem>>, %arg2: memref<4x64xf32, #tpu.memory_space<vmem>>, %arg3: memref<4xf32, #tpu.memory_space<smem>>, %arg4: memref<4x64xf32, #tpu.memory_space<vmem>>, %arg5: memref<1x64xf32, #tpu.memory_space<vmem>>, %arg6: memref<2x128x128xf32, #tpu.memory_space<vmem>>) attributes {dimension_semantics = [#tpu.dimension_semantics<parallel>], iteration_bounds = array<i64: 1>, scalar_prefetch = 0 : i64, scratch_operands = 0 : i64, tpu.core_type = #tpu.core_type<tc>, window_params = [{pipeline_mode = #tpu.pipeline_mode<synchronous>, transform_indices = @transform_0, window_bounds = array<i64: 2, 128, 128>}, {pipeline_mode = #tpu.pipeline_mode<synchronous>, transform_indices = @transform_1, window_bounds = array<i64: 4, 64>}, {transform_indices = @transform_2, window_bounds = array<i64: 4>}, {pipeline_mode = #tpu.pipeline_mode<synchronous>, transform_indices = @transform_3, window_bounds = array<i64: 4, 64>}, {pipeline_mode = #tpu.pipeline_mode<synchronous>, transform_indices = @transform_4, window_bounds = array<i64: 1, 64>}, {pipeline_mode = #tpu.pipeline_mode<synchronous>, transform_indices = @transform_5, window_bounds = array<i64: 2, 128, 128>}]} {
    %c0 = arith.constant 0 : index
    %c0_0 = arith.constant 0 : index
    %c0_1 = arith.constant 0 : index
    %0 = vector.load %arg1[%c0, %c0_0, %c0_1] : memref<2x128x128xf32, #tpu.memory_space<vmem>>, vector<1x128x128xf32>
    %1 = vector.shape_cast %0 : vector<1x128x128xf32> to vector<128x128xf32>
    %cst = arith.constant dense<0.000000e+00> : vector<128xf32>
    %2 = vector.multi_reduction <add>, %1, %cst [0] : vector<128x128xf32> to vector<128xf32>
    %3 = vector.shape_cast %2 : vector<128xf32> to vector<1x128xf32>
    %4 = vector.extract_strided_slice %3 {offsets = [0, 0], sizes = [1, 64], strides = [1, 1]} : vector<1x128xf32> to vector<1x64xf32>
    %5 = vector.extract_strided_slice %3 {offsets = [0, 64], sizes = [1, 64], strides = [1, 1]} : vector<1x128xf32> to vector<1x64xf32>
    %6 = arith.addf %4, %5 : vector<1x64xf32>
    %cst_2 = arith.constant 3.906250e-03 : f32
    %7 = vector.broadcast %cst_2 : f32 to vector<1x64xf32>
    %8 = arith.mulf %6, %7 : vector<1x64xf32>
    %cst_3 = arith.constant dense<0xFF800000> : vector<128xf32>
    %9 = vector.multi_reduction <maximumf>, %1, %cst_3 [0] : vector<128x128xf32> to vector<128xf32>
    %10 = vector.shape_cast %9 : vector<128xf32> to vector<1x128xf32>
    %11 = vector.extract_strided_slice %10 {offsets = [0, 0], sizes = [1, 64], strides = [1, 1]} : vector<1x128xf32> to vector<1x64xf32>
    %12 = vector.extract_strided_slice %10 {offsets = [0, 64], sizes = [1, 64], strides = [1, 1]} : vector<1x128xf32> to vector<1x64xf32>
    %13 = arith.maximumf %11, %12 : vector<1x64xf32>
    %14 = tpu.concatenate %8, %13 in 0 : vector<1x64xf32>, vector<1x64xf32> -> vector<2x64xf32>
    %c0_4 = arith.constant 0 : index
    %c0_5 = arith.constant 0 : index
    %15 = vector.load %arg5[%c0_4, %c0_5] : memref<1x64xf32, #tpu.memory_space<vmem>>, vector<1x64xf32>
    %c0_6 = arith.constant 0 : index
    %c0_7 = arith.constant 0 : index
    %16 = vector.load %arg2[%c0_6, %c0_7] : memref<4x64xf32, #tpu.memory_space<vmem>>, vector<1x64xf32>
    %17 = vector.broadcast %16 : vector<1x64xf32> to vector<2x64xf32>
    %18 = arith.mulf %14, %17 : vector<2x64xf32>
    %cst_8 = arith.constant dense<0.000000e+00> : vector<2xf32>
    %19 = vector.multi_reduction <add>, %18, %cst_8 [1] : vector<2x64xf32> to vector<2xf32>
    %20 = vector.shape_cast %19 : vector<2xf32> to vector<2x1xf32>
    %c0_9 = arith.constant 0 : index
    %21 = memref.load %arg3[%c0_9] : memref<4xf32, #tpu.memory_space<smem>>
    %22 = vector.broadcast %21 : f32 to vector<2x1xf32>
    %23 = arith.addf %20, %22 : vector<2x1xf32>
    %cst_10 = arith.constant 0.000000e+00 : f32
    %24 = vector.broadcast %cst_10 : f32 to vector<2x1xf32>
    %25 = arith.maximumf %23, %24 : vector<2x1xf32>
    %26 = vector.extract_strided_slice %25 {offsets = [0, 0], sizes = [1, 1], strides = [1, 1]} : vector<2x1xf32> to vector<1x1xf32>
    %27 = vector.extract_strided_slice %25 {offsets = [1, 0], sizes = [1, 1], strides = [1, 1]} : vector<2x1xf32> to vector<1x1xf32>
    %28 = arith.addf %26, %27 : vector<1x1xf32>
    %c0_11 = arith.constant 0 : index
    %c0_12 = arith.constant 0 : index
    %29 = vector.load %arg4[%c0_11, %c0_12] : memref<4x64xf32, #tpu.memory_space<vmem>>, vector<1x64xf32>
    %30 = vector.broadcast %28 : vector<1x1xf32> to vector<1x64xf32>
    %31 = arith.mulf %30, %29 : vector<1x64xf32>
    %32 = arith.addf %15, %31 : vector<1x64xf32>
    %c1 = arith.constant 1 : index
    %c0_13 = arith.constant 0 : index
    %33 = vector.load %arg2[%c1, %c0_13] : memref<4x64xf32, #tpu.memory_space<vmem>>, vector<1x64xf32>
    %34 = vector.broadcast %33 : vector<1x64xf32> to vector<2x64xf32>
    %35 = arith.mulf %14, %34 : vector<2x64xf32>
    %cst_14 = arith.constant dense<0.000000e+00> : vector<2xf32>
    %36 = vector.multi_reduction <add>, %35, %cst_14 [1] : vector<2x64xf32> to vector<2xf32>
    %37 = vector.shape_cast %36 : vector<2xf32> to vector<2x1xf32>
    %c1_15 = arith.constant 1 : index
    %38 = memref.load %arg3[%c1_15] : memref<4xf32, #tpu.memory_space<smem>>
    %39 = vector.broadcast %38 : f32 to vector<2x1xf32>
    %40 = arith.addf %37, %39 : vector<2x1xf32>
    %cst_16 = arith.constant 0.000000e+00 : f32
    %41 = vector.broadcast %cst_16 : f32 to vector<2x1xf32>
    %42 = arith.maximumf %40, %41 : vector<2x1xf32>
    %43 = vector.extract_strided_slice %42 {offsets = [0, 0], sizes = [1, 1], strides = [1, 1]} : vector<2x1xf32> to vector<1x1xf32>
    %44 = vector.extract_strided_slice %42 {offsets = [1, 0], sizes = [1, 1], strides = [1, 1]} : vector<2x1xf32> to vector<1x1xf32>
    %45 = arith.addf %43, %44 : vector<1x1xf32>
    %c1_17 = arith.constant 1 : index
    %c0_18 = arith.constant 0 : index
    %46 = vector.load %arg4[%c1_17, %c0_18] : memref<4x64xf32, #tpu.memory_space<vmem>>, vector<1x64xf32>
    %47 = vector.broadcast %45 : vector<1x1xf32> to vector<1x64xf32>
    %48 = arith.mulf %47, %46 : vector<1x64xf32>
    %49 = arith.addf %32, %48 : vector<1x64xf32>
    %c2 = arith.constant 2 : index
    %c0_19 = arith.constant 0 : index
    %50 = vector.load %arg2[%c2, %c0_19] : memref<4x64xf32, #tpu.memory_space<vmem>>, vector<1x64xf32>
    %51 = vector.broadcast %50 : vector<1x64xf32> to vector<2x64xf32>
    %52 = arith.mulf %14, %51 : vector<2x64xf32>
    %cst_20 = arith.constant dense<0.000000e+00> : vector<2xf32>
    %53 = vector.multi_reduction <add>, %52, %cst_20 [1] : vector<2x64xf32> to vector<2xf32>
    %54 = vector.shape_cast %53 : vector<2xf32> to vector<2x1xf32>
    %c2_21 = arith.constant 2 : index
    %55 = memref.load %arg3[%c2_21] : memref<4xf32, #tpu.memory_space<smem>>
    %56 = vector.broadcast %55 : f32 to vector<2x1xf32>
    %57 = arith.addf %54, %56 : vector<2x1xf32>
    %cst_22 = arith.constant 0.000000e+00 : f32
    %58 = vector.broadcast %cst_22 : f32 to vector<2x1xf32>
    %59 = arith.maximumf %57, %58 : vector<2x1xf32>
    %60 = vector.extract_strided_slice %59 {offsets = [0, 0], sizes = [1, 1], strides = [1, 1]} : vector<2x1xf32> to vector<1x1xf32>
    %61 = vector.extract_strided_slice %59 {offsets = [1, 0], sizes = [1, 1], strides = [1, 1]} : vector<2x1xf32> to vector<1x1xf32>
    %62 = arith.addf %60, %61 : vector<1x1xf32>
    %c2_23 = arith.constant 2 : index
    %c0_24 = arith.constant 0 : index
    %63 = vector.load %arg4[%c2_23, %c0_24] : memref<4x64xf32, #tpu.memory_space<vmem>>, vector<1x64xf32>
    %64 = vector.broadcast %62 : vector<1x1xf32> to vector<1x64xf32>
    %65 = arith.mulf %64, %63 : vector<1x64xf32>
    %66 = arith.addf %49, %65 : vector<1x64xf32>
    %c3 = arith.constant 3 : index
    %c0_25 = arith.constant 0 : index
    %67 = vector.load %arg2[%c3, %c0_25] : memref<4x64xf32, #tpu.memory_space<vmem>>, vector<1x64xf32>
    %68 = vector.broadcast %67 : vector<1x64xf32> to vector<2x64xf32>
    %69 = arith.mulf %14, %68 : vector<2x64xf32>
    %cst_26 = arith.constant dense<0.000000e+00> : vector<2xf32>
    %70 = vector.multi_reduction <add>, %69, %cst_26 [1] : vector<2x64xf32> to vector<2xf32>
    %71 = vector.shape_cast %70 : vector<2xf32> to vector<2x1xf32>
    %c3_27 = arith.constant 3 : index
    %72 = memref.load %arg3[%c3_27] : memref<4xf32, #tpu.memory_space<smem>>
    %73 = vector.broadcast %72 : f32 to vector<2x1xf32>
    %74 = arith.addf %71, %73 : vector<2x1xf32>
    %cst_28 = arith.constant 0.000000e+00 : f32
    %75 = vector.broadcast %cst_28 : f32 to vector<2x1xf32>
    %76 = arith.maximumf %74, %75 : vector<2x1xf32>
    %77 = vector.extract_strided_slice %76 {offsets = [0, 0], sizes = [1, 1], strides = [1, 1]} : vector<2x1xf32> to vector<1x1xf32>
    %78 = vector.extract_strided_slice %76 {offsets = [1, 0], sizes = [1, 1], strides = [1, 1]} : vector<2x1xf32> to vector<1x1xf32>
    %79 = arith.addf %77, %78 : vector<1x1xf32>
    %c3_29 = arith.constant 3 : index
    %c0_30 = arith.constant 0 : index
    %80 = vector.load %arg4[%c3_29, %c0_30] : memref<4x64xf32, #tpu.memory_space<vmem>>, vector<1x64xf32>
    %81 = vector.broadcast %79 : vector<1x1xf32> to vector<1x64xf32>
    %82 = arith.mulf %81, %80 : vector<1x64xf32>
    %83 = arith.addf %66, %82 : vector<1x64xf32>
    %84 = math.absf %83 : vector<1x64xf32>
    %cst_31 = arith.constant 0.000000e+00 : f32
    %85 = vector.broadcast %cst_31 : f32 to vector<1x64xf32>
    %86 = arith.subf %85, %84 : vector<1x64xf32>
    %87 = math.exp %86 : vector<1x64xf32>
    %cst_32 = arith.constant 0.000000e+00 : f32
    %88 = vector.broadcast %cst_32 : f32 to vector<1x64xf32>
    %89 = arith.cmpf oge, %83, %88 : vector<1x64xf32>
    %cst_33 = arith.constant 1.000000e+00 : f32
    %90 = vector.broadcast %cst_33 : f32 to vector<1x64xf32>
    %91 = arith.addf %90, %87 : vector<1x64xf32>
    %cst_34 = arith.constant 1.000000e+00 : f32
    %92 = vector.broadcast %cst_34 : f32 to vector<1x64xf32>
    %93 = arith.divf %92, %91 : vector<1x64xf32>
    %cst_35 = arith.constant 1.000000e+00 : f32
    %94 = vector.broadcast %cst_35 : f32 to vector<1x64xf32>
    %95 = arith.addf %94, %87 : vector<1x64xf32>
    %96 = arith.divf %87, %95 : vector<1x64xf32>
    %97 = arith.select %89, %93, %96 : vector<1x64xi1>, vector<1x64xf32>
    %98 = tpu.concatenate %97, %97 in 1 : vector<1x64xf32>, vector<1x64xf32> -> vector<1x128xf32>
    %99 = vector.broadcast %98 : vector<1x128xf32> to vector<128x128xf32>
    %100 = arith.mulf %1, %99 : vector<128x128xf32>
    %c0_36 = arith.constant 0 : index
    %c0_37 = arith.constant 0 : index
    %c0_38 = arith.constant 0 : index
    %101 = vector.load %arg6[%c0_36, %c0_37, %c0_38] : memref<2x128x128xf32, #tpu.memory_space<vmem>>, vector<1x128x128xf32>
    %102 = vector.shape_cast %101 : vector<1x128x128xf32> to vector<128x128xf32>
    %103 = vector.shape_cast %100 : vector<128x128xf32> to vector<1x128x128xf32>
    tpu.vector_store %arg6[%c0_36, %c0_37, %c0_38], %103 {strides = array<i32>} : memref<2x128x128xf32, #tpu.memory_space<vmem>>, vector<1x128x128xf32>,
    %c1_39 = arith.constant 1 : index
    %c0_40 = arith.constant 0 : index
    %c0_41 = arith.constant 0 : index
    %104 = vector.load %arg1[%c1_39, %c0_40, %c0_41] : memref<2x128x128xf32, #tpu.memory_space<vmem>>, vector<1x128x128xf32>
    %105 = vector.shape_cast %104 : vector<1x128x128xf32> to vector<128x128xf32>
    %cst_42 = arith.constant dense<0.000000e+00> : vector<128xf32>
    %106 = vector.multi_reduction <add>, %105, %cst_42 [0] : vector<128x128xf32> to vector<128xf32>
    %107 = vector.shape_cast %106 : vector<128xf32> to vector<1x128xf32>
    %108 = vector.extract_strided_slice %107 {offsets = [0, 0], sizes = [1, 64], strides = [1, 1]} : vector<1x128xf32> to vector<1x64xf32>
    %109 = vector.extract_strided_slice %107 {offsets = [0, 64], sizes = [1, 64], strides = [1, 1]} : vector<1x128xf32> to vector<1x64xf32>
    %110 = arith.addf %108, %109 : vector<1x64xf32>
    %cst_43 = arith.constant 3.906250e-03 : f32
    %111 = vector.broadcast %cst_43 : f32 to vector<1x64xf32>
    %112 = arith.mulf %110, %111 : vector<1x64xf32>
    %cst_44 = arith.constant dense<0xFF800000> : vector<128xf32>
    %113 = vector.multi_reduction <maximumf>, %105, %cst_44 [0] : vector<128x128xf32> to vector<128xf32>
    %114 = vector.shape_cast %113 : vector<128xf32> to vector<1x128xf32>
    %115 = vector.extract_strided_slice %114 {offsets = [0, 0], sizes = [1, 64], strides = [1, 1]} : vector<1x128xf32> to vector<1x64xf32>
    %116 = vector.extract_strided_slice %114 {offsets = [0, 64], sizes = [1, 64], strides = [1, 1]} : vector<1x128xf32> to vector<1x64xf32>
    %117 = arith.maximumf %115, %116 : vector<1x64xf32>
    %118 = tpu.concatenate %112, %117 in 0 : vector<1x64xf32>, vector<1x64xf32> -> vector<2x64xf32>
    %c0_45 = arith.constant 0 : index
    %c0_46 = arith.constant 0 : index
    %119 = vector.load %arg5[%c0_45, %c0_46] : memref<1x64xf32, #tpu.memory_space<vmem>>, vector<1x64xf32>
    %c0_47 = arith.constant 0 : index
    %c0_48 = arith.constant 0 : index
    %120 = vector.load %arg2[%c0_47, %c0_48] : memref<4x64xf32, #tpu.memory_space<vmem>>, vector<1x64xf32>
    %121 = vector.broadcast %120 : vector<1x64xf32> to vector<2x64xf32>
    %122 = arith.mulf %118, %121 : vector<2x64xf32>
    %cst_49 = arith.constant dense<0.000000e+00> : vector<2xf32>
    %123 = vector.multi_reduction <add>, %122, %cst_49 [1] : vector<2x64xf32> to vector<2xf32>
    %124 = vector.shape_cast %123 : vector<2xf32> to vector<2x1xf32>
    %c0_50 = arith.constant 0 : index
    %125 = memref.load %arg3[%c0_50] : memref<4xf32, #tpu.memory_space<smem>>
    %126 = vector.broadcast %125 : f32 to vector<2x1xf32>
    %127 = arith.addf %124, %126 : vector<2x1xf32>
    %cst_51 = arith.constant 0.000000e+00 : f32
    %128 = vector.broadcast %cst_51 : f32 to vector<2x1xf32>
    %129 = arith.maximumf %127, %128 : vector<2x1xf32>
    %130 = vector.extract_strided_slice %129 {offsets = [0, 0], sizes = [1, 1], strides = [1, 1]} : vector<2x1xf32> to vector<1x1xf32>
    %131 = vector.extract_strided_slice %129 {offsets = [1, 0], sizes = [1, 1], strides = [1, 1]} : vector<2x1xf32> to vector<1x1xf32>
    %132 = arith.addf %130, %131 : vector<1x1xf32>
    %c0_52 = arith.constant 0 : index
    %c0_53 = arith.constant 0 : index
    %133 = vector.load %arg4[%c0_52, %c0_53] : memref<4x64xf32, #tpu.memory_space<vmem>>, vector<1x64xf32>
    %134 = vector.broadcast %132 : vector<1x1xf32> to vector<1x64xf32>
    %135 = arith.mulf %134, %133 : vector<1x64xf32>
    %136 = arith.addf %119, %135 : vector<1x64xf32>
    %c1_54 = arith.constant 1 : index
    %c0_55 = arith.constant 0 : index
    %137 = vector.load %arg2[%c1_54, %c0_55] : memref<4x64xf32, #tpu.memory_space<vmem>>, vector<1x64xf32>
    %138 = vector.broadcast %137 : vector<1x64xf32> to vector<2x64xf32>
    %139 = arith.mulf %118, %138 : vector<2x64xf32>
    %cst_56 = arith.constant dense<0.000000e+00> : vector<2xf32>
    %140 = vector.multi_reduction <add>, %139, %cst_56 [1] : vector<2x64xf32> to vector<2xf32>
    %141 = vector.shape_cast %140 : vector<2xf32> to vector<2x1xf32>
    %c1_57 = arith.constant 1 : index
    %142 = memref.load %arg3[%c1_57] : memref<4xf32, #tpu.memory_space<smem>>
    %143 = vector.broadcast %142 : f32 to vector<2x1xf32>
    %144 = arith.addf %141, %143 : vector<2x1xf32>
    %cst_58 = arith.constant 0.000000e+00 : f32
    %145 = vector.broadcast %cst_58 : f32 to vector<2x1xf32>
    %146 = arith.maximumf %144, %145 : vector<2x1xf32>
    %147 = vector.extract_strided_slice %146 {offsets = [0, 0], sizes = [1, 1], strides = [1, 1]} : vector<2x1xf32> to vector<1x1xf32>
    %148 = vector.extract_strided_slice %146 {offsets = [1, 0], sizes = [1, 1], strides = [1, 1]} : vector<2x1xf32> to vector<1x1xf32>
    %149 = arith.addf %147, %148 : vector<1x1xf32>
    %c1_59 = arith.constant 1 : index
    %c0_60 = arith.constant 0 : index
    %150 = vector.load %arg4[%c1_59, %c0_60] : memref<4x64xf32, #tpu.memory_space<vmem>>, vector<1x64xf32>
    %151 = vector.broadcast %149 : vector<1x1xf32> to vector<1x64xf32>
    %152 = arith.mulf %151, %150 : vector<1x64xf32>
    %153 = arith.addf %136, %152 : vector<1x64xf32>
    %c2_61 = arith.constant 2 : index
    %c0_62 = arith.constant 0 : index
    %154 = vector.load %arg2[%c2_61, %c0_62] : memref<4x64xf32, #tpu.memory_space<vmem>>, vector<1x64xf32>
    %155 = vector.broadcast %154 : vector<1x64xf32> to vector<2x64xf32>
    %156 = arith.mulf %118, %155 : vector<2x64xf32>
    %cst_63 = arith.constant dense<0.000000e+00> : vector<2xf32>
    %157 = vector.multi_reduction <add>, %156, %cst_63 [1] : vector<2x64xf32> to vector<2xf32>
    %158 = vector.shape_cast %157 : vector<2xf32> to vector<2x1xf32>
    %c2_64 = arith.constant 2 : index
    %159 = memref.load %arg3[%c2_64] : memref<4xf32, #tpu.memory_space<smem>>
    %160 = vector.broadcast %159 : f32 to vector<2x1xf32>
    %161 = arith.addf %158, %160 : vector<2x1xf32>
    %cst_65 = arith.constant 0.000000e+00 : f32
    %162 = vector.broadcast %cst_65 : f32 to vector<2x1xf32>
    %163 = arith.maximumf %161, %162 : vector<2x1xf32>
    %164 = vector.extract_strided_slice %163 {offsets = [0, 0], sizes = [1, 1], strides = [1, 1]} : vector<2x1xf32> to vector<1x1xf32>
    %165 = vector.extract_strided_slice %163 {offsets = [1, 0], sizes = [1, 1], strides = [1, 1]} : vector<2x1xf32> to vector<1x1xf32>
    %166 = arith.addf %164, %165 : vector<1x1xf32>
    %c2_66 = arith.constant 2 : index
    %c0_67 = arith.constant 0 : index
    %167 = vector.load %arg4[%c2_66, %c0_67] : memref<4x64xf32, #tpu.memory_space<vmem>>, vector<1x64xf32>
    %168 = vector.broadcast %166 : vector<1x1xf32> to vector<1x64xf32>
    %169 = arith.mulf %168, %167 : vector<1x64xf32>
    %170 = arith.addf %153, %169 : vector<1x64xf32>
    %c3_68 = arith.constant 3 : index
    %c0_69 = arith.constant 0 : index
    %171 = vector.load %arg2[%c3_68, %c0_69] : memref<4x64xf32, #tpu.memory_space<vmem>>, vector<1x64xf32>
    %172 = vector.broadcast %171 : vector<1x64xf32> to vector<2x64xf32>
    %173 = arith.mulf %118, %172 : vector<2x64xf32>
    %cst_70 = arith.constant dense<0.000000e+00> : vector<2xf32>
    %174 = vector.multi_reduction <add>, %173, %cst_70 [1] : vector<2x64xf32> to vector<2xf32>
    %175 = vector.shape_cast %174 : vector<2xf32> to vector<2x1xf32>
    %c3_71 = arith.constant 3 : index
    %176 = memref.load %arg3[%c3_71] : memref<4xf32, #tpu.memory_space<smem>>
    %177 = vector.broadcast %176 : f32 to vector<2x1xf32>
    %178 = arith.addf %175, %177 : vector<2x1xf32>
    %cst_72 = arith.constant 0.000000e+00 : f32
    %179 = vector.broadcast %cst_72 : f32 to vector<2x1xf32>
    %180 = arith.maximumf %178, %179 : vector<2x1xf32>
    %181 = vector.extract_strided_slice %180 {offsets = [0, 0], sizes = [1, 1], strides = [1, 1]} : vector<2x1xf32> to vector<1x1xf32>
    %182 = vector.extract_strided_slice %180 {offsets = [1, 0], sizes = [1, 1], strides = [1, 1]} : vector<2x1xf32> to vector<1x1xf32>
    %183 = arith.addf %181, %182 : vector<1x1xf32>
    %c3_73 = arith.constant 3 : index
    %c0_74 = arith.constant 0 : index
    %184 = vector.load %arg4[%c3_73, %c0_74] : memref<4x64xf32, #tpu.memory_space<vmem>>, vector<1x64xf32>
    %185 = vector.broadcast %183 : vector<1x1xf32> to vector<1x64xf32>
    %186 = arith.mulf %185, %184 : vector<1x64xf32>
    %187 = arith.addf %170, %186 : vector<1x64xf32>
    %188 = math.absf %187 : vector<1x64xf32>
    %cst_75 = arith.constant 0.000000e+00 : f32
    %189 = vector.broadcast %cst_75 : f32 to vector<1x64xf32>
    %190 = arith.subf %189, %188 : vector<1x64xf32>
    %191 = math.exp %190 : vector<1x64xf32>
    %cst_76 = arith.constant 0.000000e+00 : f32
    %192 = vector.broadcast %cst_76 : f32 to vector<1x64xf32>
    %193 = arith.cmpf oge, %187, %192 : vector<1x64xf32>
    %cst_77 = arith.constant 1.000000e+00 : f32
    %194 = vector.broadcast %cst_77 : f32 to vector<1x64xf32>
    %195 = arith.addf %194, %191 : vector<1x64xf32>
    %cst_78 = arith.constant 1.000000e+00 : f32
    %196 = vector.broadcast %cst_78 : f32 to vector<1x64xf32>
    %197 = arith.divf %196, %195 : vector<1x64xf32>
    %cst_79 = arith.constant 1.000000e+00 : f32
    %198 = vector.broadcast %cst_79 : f32 to vector<1x64xf32>
    %199 = arith.addf %198, %191 : vector<1x64xf32>
    %200 = arith.divf %191, %199 : vector<1x64xf32>
    %201 = arith.select %193, %197, %200 : vector<1x64xi1>, vector<1x64xf32>
    %202 = tpu.concatenate %201, %201 in 1 : vector<1x64xf32>, vector<1x64xf32> -> vector<1x128xf32>
    %203 = vector.broadcast %202 : vector<1x128xf32> to vector<128x128xf32>
    %204 = arith.mulf %105, %203 : vector<128x128xf32>
    %c1_80 = arith.constant 1 : index
    %c0_81 = arith.constant 0 : index
    %c0_82 = arith.constant 0 : index
    %205 = vector.load %arg6[%c1_80, %c0_81, %c0_82] : memref<2x128x128xf32, #tpu.memory_space<vmem>>, vector<1x128x128xf32>
    %206 = vector.shape_cast %205 : vector<1x128x128xf32> to vector<128x128xf32>
    %207 = vector.shape_cast %204 : vector<128x128xf32> to vector<1x128x128xf32>
    tpu.vector_store %arg6[%c1_80, %c0_81, %c0_82], %207 {strides = array<i32>} : memref<2x128x128xf32, #tpu.memory_space<vmem>>, vector<1x128x128xf32>,
    return
  }
  func.func @transform_0(%arg0: i32) -> (i32, i32, i32) {
    %c0_i32 = arith.constant 0 : i32
    %c0_i32_0 = arith.constant 0 : i32
    %c0_i32_1 = arith.constant 0 : i32
    %c0_i32_2 = arith.constant 0 : i32
    return %c0_i32, %c0_i32_0, %c0_i32_1 : i32, i32, i32
  }
  func.func @transform_1(%arg0: i32) -> (i32, i32) {
    %c0_i32 = arith.constant 0 : i32
    %c0_i32_0 = arith.constant 0 : i32
    %c0_i32_1 = arith.constant 0 : i32
    return %c0_i32, %c0_i32_0 : i32, i32
  }
  func.func @transform_2(%arg0: i32) -> i32 {
    %c0_i32 = arith.constant 0 : i32
    %c0_i32_0 = arith.constant 0 : i32
    return %c0_i32 : i32
  }
  func.func @transform_3(%arg0: i32) -> (i32, i32) {
    %c0_i32 = arith.constant 0 : i32
    %c0_i32_0 = arith.constant 0 : i32
    %c0_i32_1 = arith.constant 0 : i32
    return %c0_i32, %c0_i32_0 : i32, i32
  }
  func.func @transform_4(%arg0: i32) -> (i32, i32) {
    %c0_i32 = arith.constant 0 : i32
    %c0_i32_0 = arith.constant 0 : i32
    %c0_i32_1 = arith.constant 0 : i32
    return %c0_i32, %c0_i32_0 : i32, i32
  }
  func.func @transform_5(%arg0: i32) -> (i32, i32, i32) {
    %c0_i32 = arith.constant 0 : i32
    %c0_i32_0 = arith.constant 0 : i32
    %c0_i32_1 = arith.constant 0 : i32
    %c0_i32_2 = arith.constant 0 : i32
    return %c0_i32, %c0_i32_0, %c0_i32_1 : i32, i32, i32
  }
}

</mosaic_0001>

<llo_original>
// kernel: channel_gate_forward.1
$region0: #{channel_gate_forward.1}
  #allocation0 [shape = 'u32[]', space=smem, size = 0x4, offset = 0x4, fixed_abs, tag = 'smem constant byte address 0x4 - core index']
  #allocation1 [shape = 'u32[72,128]{1,0:T(1,128)}', space=vmem, size = 0x9000, scoped, tag = 'internal scratch']
  %s0 = inlined_call_operand.vmem [shape: f32[2,128,128], index: 0, kind: input, shape index: {}]
  %s1 = inlined_call_operand.vmem [shape: f32[4,64], index: 1, kind: input, shape index: {}]
  %s2 = inlined_call_operand.vmem [shape: f32[4], index: 2, kind: input, shape index: {}]
  %s3 = inlined_call_operand.vmem [shape: f32[4,64], index: 3, kind: input, shape index: {}]
  %s4 = inlined_call_operand.vmem [shape: f32[1,64], index: 4, kind: input, shape index: {}]
  %s5 = inlined_call_operand.vmem [shape: f32[2,128,128], index: 5, kind: output, shape index: {}]
  %s6 = sld [smem:[#allocation0]]
  $region34: #{channel_gate_forward.1} parent=0
    _
  %s8 = ssub.s32 1, %s6
  %s9 = scalar_select 0, %s8, %s6
  $region1: #{channel_gate_forward.1} parent=0
    #allocation2 [shape = 'u8[512]{0}', space=smem, size = 0x200, scoped, tag = 'input window, operand 2, single buffered']
    #allocation3 [shape = 's32[1]{0}', space=sflag, size = 0x4, scoped, tag = 'scoped memory for channel_gate_forward.1']
    %10 = vsyncpa [#allocation3], 0
    // Predicated region
    $region2: #{channel_gate_forward.1} parent=1 // pred_check
      _
    $region3: #{channel_gate_forward.1} parent=1 // pred_check_branch
      %12 = sbr.rel (0) target = $region5
    $region4: #{channel_gate_forward.1} parent=1 // pred_region
      _
    $region5: #{channel_gate_forward.1} parent=1 // pred_fallthru
      _
    // Predicated region
    $region6: #{channel_gate_forward.1} parent=1 // pred_check
      _
    $region7: #{channel_gate_forward.1} parent=1 // pred_check_branch
      %14 = sbr.rel (0) target = $region9
    $region8: #{channel_gate_forward.1} parent=1 // pred_region
      _
    $region9: #{channel_gate_forward.1} parent=1 // pred_fallthru
      _
    // Predicated region
    $region10: #{channel_gate_forward.1} parent=1 // pred_check
      _
    $region11: #{channel_gate_forward.1} parent=1 // pred_check_branch
      %16 = sbr.rel (0) target = $region13
    $region12: #{channel_gate_forward.1} parent=1 // pred_region
      %18 = vsyncadd [#allocation3], 0
      %s20 = sshll.u32 %s2, 4
      %s21 = int_to_ptr.vmem [resolvable:$true] %s20
      %23 = dma.vmem_to_smem %s21, 16, [#allocation2], [#allocation3]
    $region13: #{channel_gate_forward.1} parent=1 // pred_fallthru
      _
    // Predicated region
    $region14: #{channel_gate_forward.1} parent=1 // pred_check
      _
    $region15: #{channel_gate_forward.1} parent=1 // pred_check_branch
      %25 = sbr.rel (0) target = $region17
    $region16: #{channel_gate_forward.1} parent=1 // pred_region
      _
    $region17: #{channel_gate_forward.1} parent=1 // pred_fallthru
      _
    // Predicated region
    $region18: #{channel_gate_forward.1} parent=1 // pred_check
      _
    $region19: #{channel_gate_forward.1} parent=1 // pred_check_branch
      %27 = sbr.rel (0) target = $region21
    $region20: #{channel_gate_forward.1} parent=1 // pred_region
      _
    $region21: #{channel_gate_forward.1} parent=1 // pred_fallthru
      _
    // Predicated region
    $region22: #{channel_gate_forward.1} parent=1 // pred_check
      _
    $region23: #{channel_gate_forward.1} parent=1 // pred_check_branch
      %29 = sbr.rel (0) target = $region25
    $region24: #{channel_gate_forward.1} parent=1 // pred_region
      %31 = dma.done [#allocation3], 16
    $region25: #{channel_gate_forward.1} parent=1 // pred_fallthru
      _
    %32 = sfence
    %v33 = vld [vmem:[%s0] sm:$0xff]
    %v34 = vld [vmem:[%s0 + $0x8] sm:$0xff]
    %v35 = vld [vmem:[%s0 + $0x10] sm:$0xff]
    %v36 = vld [vmem:[%s0 + $0x18] sm:$0xff]
    %v37 = vld [vmem:[%s0 + $0x20] sm:$0xff]
    %v38 = vld [vmem:[%s0 + $0x28] sm:$0xff]
    %v39 = vld [vmem:[%s0 + $0x30] sm:$0xff]
    %v40 = vld [vmem:[%s0 + $0x38] sm:$0xff]
    %v41 = vld [vmem:[%s0 + $0x40] sm:$0xff]
    %v42 = vld [vmem:[%s0 + $0x48] sm:$0xff]
    %v43 = vld [vmem:[%s0 + $0x50] sm:$0xff]
    %v44 = vld [vmem:[%s0 + $0x58] sm:$0xff]
    %v45 = vld [vmem:[%s0 + $0x60] sm:$0xff]
    %v46 = vld [vmem:[%s0 + $0x68] sm:$0xff]
    %v47 = vld [vmem:[%s0 + $0x70] sm:$0xff]
    %v48 = vld [vmem:[%s0 + $0x78] sm:$0xff]
    %v49 = vadd.f32 %v33, %v34
    %v50 = vadd.f32 %v49, %v35
    %v51 = vadd.f32 %v50, %v36
    %v52 = vadd.f32 %v51, %v37
    %v53 = vadd.f32 %v52, %v38
    %v54 = vadd.f32 %v53, %v39
    %v55 = vadd.f32 %v54, %v40
    %v56 = vadd.f32 %v55, %v41
    %v57 = vadd.f32 %v56, %v42
    %v58 = vadd.f32 %v57, %v43
    %v59 = vadd.f32 %v58, %v44
    %v60 = vadd.f32 %v59, %v45
    %v61 = vadd.f32 %v60, %v46
    %v62 = vadd.f32 %v61, %v47
    %v63 = vadd.f32 %v62, %v48
    %v64 = vrot.slane %v63, 4
    %v65 = vadd.f32 %v63, %v64
    %v66 = vrot.slane %v65, 2
    %v67 = vadd.f32 %v65, %v66
    %v68 = vrot.slane %v67, 1
    %v69 = vadd.f32 %v67, %v68
    %71 = vrot.lane.b32.xlu0 %v69, 64
    %v72 = vpop.permute.xlu0 %71
    %v74 = vadd.f32 %v69, %v72
    %v75 = vmul.f32 %v74, 0.00390625
    %v76 = vmax.f32 %v33, %v37
    %v77 = vmax.f32 %v34, %v38
    %v78 = vmax.f32 %v35, %v39
    %v79 = vmax.f32 %v36, %v40
    %v80 = vmax.f32 %v76, %v41
    %v81 = vmax.f32 %v77, %v42
    %v82 = vmax.f32 %v78, %v43
    %v83 = vmax.f32 %v79, %v44
    %v84 = vmax.f32 %v80, %v45
    %v85 = vmax.f32 %v81, %v46
    %v86 = vmax.f32 %v82, %v47
    %v87 = vmax.f32 %v83, %v48
    %v88 = vmax.f32 %v84, %v85
    %v89 = vmax.f32 %v86, %v87
    %v90 = vmax.f32 %v88, %v89
    %v91 = vrot.slane %v90, 4
    %v92 = vmax.f32 %v90, %v91
    %v93 = vrot.slane %v92, 2
    %v94 = vmax.f32 %v92, %v93
    %v95 = vrot.slane %v94, 1
    %v96 = vmax.f32 %v94, %v95
    %98 = vrot.lane.b32.xlu0 %v96, 64
    %v99 = vpop.permute.xlu0 %98
    %v101 = vmax.f32 %v96, %v99
    %v103 = vrot.slane %v101, 7
    %vm105 = vcmask 1040384
    %v106 = vsel %vm105, %v75, %v103
    %v107 = vld [vmem:[%s4] sm:$0x1]
    %v108 = vld [vmem:[%s1] sm:$0x1]
    %v109 = vperm.slane %v108, 0
    %v110 = vmul.f32 %v106, %v109
    %vm111 = vcmask 517120
    %v112 = vsel %vm111, %v110, 0.0
    %113 = vadd.xlane.f32.xlu0 %v112
    %v114 = vpop.xlane.xlu0 %113
    %s115 = sld [smem:[#allocation2]]
    %v116 = vstv %s115
    %v117 = vadd.f32 %v114, %v116
    %v118 = vmax.f32 %v117, 0.0
    %v120 = vrot.slane %v118, 1
    %v122 = vadd.f32 %v118, %v120
    %v123 = vld [vmem:[%s3] sm:$0x1]
    %125 = vset.pattern.permute.xlu0 0
    %126 = vperm.xlu0 %125, %v122
    %v127 = vpop.permute.xlu0 %126
    %v129 = vmul.f32 %v127, %v123
    %v130 = vadd.f32 %v107, %v129
    %v131 = vld [vmem:[%s1 + $0x1] sm:$0x1]
    %v132 = vperm.slane %v131, 0
    %v133 = vmul.f32 %v106, %v132
    %v134 = vsel %vm111, %v133, 0.0
    %135 = vadd.xlane.f32.xlu0 %v134
    %v136 = vpop.xlane.xlu0 %135
    %s137 = sld [smem:[#allocation2 + $0x1]]
    %v138 = vstv %s137
    %v139 = vadd.f32 %v136, %v138
    %v140 = vmax.f32 %v139, 0.0
    %v142 = vrot.slane %v140, 1
    %v144 = vadd.f32 %v140, %v142
    %v145 = vld [vmem:[%s3 + $0x1] sm:$0x1]
    %147 = vset.pattern.permute.xlu0 0
    %148 = vperm.xlu0 %147, %v144
    %v149 = vpop.permute.xlu0 %148
    %v151 = vmul.f32 %v149, %v145
    %v152 = vadd.f32 %v130, %v151
    %v153 = vld [vmem:[%s1 + $0x2] sm:$0x1]
    %v154 = vperm.slane %v153, 0
    %v155 = vmul.f32 %v106, %v154
    %v156 = vsel %vm111, %v155, 0.0
    %157 = vadd.xlane.f32.xlu0 %v156
    %v158 = vpop.xlane.xlu0 %157
    %s159 = sld [smem:[#allocation2 + $0x2]]
    %v160 = vstv %s159
    %v161 = vadd.f32 %v158, %v160
    %v162 = vmax.f32 %v161, 0.0
    %v164 = vrot.slane %v162, 1
    %v166 = vadd.f32 %v162, %v164
    %v167 = vld [vmem:[%s3 + $0x2] sm:$0x1]
    %169 = vset.pattern.permute.xlu0 0
    %170 = vperm.xlu0 %169, %v166
    %v171 = vpop.permute.xlu0 %170
    %v173 = vmul.f32 %v171, %v167
    %v174 = vadd.f32 %v152, %v173
    %v175 = vld [vmem:[%s1 + $0x3] sm:$0x1]
    %v176 = vperm.slane %v175, 0
    %v177 = vmul.f32 %v106, %v176
    %v178 = vsel %vm111, %v177, 0.0
    %179 = vadd.xlane.f32.xlu0 %v178
    %v180 = vpop.xlane.xlu0 %179
    %s181 = sld [smem:[#allocation2 + $0x3]]
    %v182 = vstv %s181
    %v183 = vadd.f32 %v180, %v182
    %v184 = vmax.f32 %v183, 0.0
    %v186 = vrot.slane %v184, 1
    %v188 = vadd.f32 %v184, %v186
    %v189 = vld [vmem:[%s3 + $0x3] sm:$0x1]
    %191 = vset.pattern.permute.xlu0 0
    %192 = vperm.xlu0 %191, %v188
    %v193 = vpop.permute.xlu0 %192
    %v195 = vmul.f32 %v193, %v189
    %v196 = vadd.f32 %v174, %v195
    %v197 = vand.u32 2147483647, %v196
    %v198 = vsub.f32 0.0, %v197
    %v199 = vmul.f32 %v198, 1.442695
    %v200 = vpow.pop %v199
    %vm201 = vcmp.ge.f32.partialorder %v196, 0.0
    %v202 = vadd.f32 %v200, 1.0
    %v203 = vrcp.pop %v202
    %v204 = vmul.f32 %v202, %v203
    %v205 = vsub.f32 1.0, %v204
    %v206 = vmul.f32 %v203, %v205
    %v207 = vadd.f32 %v203, %v206
    %vm208 = vweird.f32 %v202
    %vm209 = vweird.f32 %v203
    %vm210 = vmor %vm208, %vm209
    %v211 = vsel %vm210, %v203, %v207
    %v212 = vand.u32 2147483647, %v202
    %vm213 = vcmp.eq.f32.partialorder %v212, 8.507059e+37
    %v214 = vand.u32 %v202, 2147483648
    %v215 = vor.u32 1.1754944e-38, %v214
    %v216 = vsel %vm213, %v215, %v211
    %v217 = vmul.f32 1.0, %v216
    %v218 = vmul.f32 %v200, %v216
    %v219 = vsel %vm201, %v217, %v218
    %v221 = vperm.slane %v219, 0
    %222 = vrot.lane.b32.xlu0 %v221, 64
    %v223 = vpop.permute.xlu0 %222
    %vm225 = vcmask 523264
    %v226 = vsel %vm225, %v219, %v223
    %v227 = vperm.slane %v226, 0
    %v228 = vmul.f32 %v33, %v227
    %v229 = vmul.f32 %v34, %v227
    %v230 = vmul.f32 %v35, %v227
    %v231 = vmul.f32 %v36, %v227
    %v232 = vmul.f32 %v37, %v227
    %v233 = vmul.f32 %v38, %v227
    %v234 = vmul.f32 %v39, %v227
    %v235 = vmul.f32 %v40, %v227
    %v236 = vmul.f32 %v41, %v227
    %v237 = vmul.f32 %v42, %v227
    %v238 = vmul.f32 %v43, %v227
    %v239 = vmul.f32 %v44, %v227
    %v240 = vmul.f32 %v45, %v227
    %v241 = vmul.f32 %v46, %v227
    %v242 = vmul.f32 %v47, %v227
    %v243 = vmul.f32 %v48, %v227
    %244 = vst [vmem:[%s5] sm:$0xff] %v228
    %245 = vst [vmem:[%s5 + $0x8] sm:$0xff] %v229
    %246 = vst [vmem:[%s5 + $0x10] sm:$0xff] %v230
    %247 = vst [vmem:[%s5 + $0x18] sm:$0xff] %v231
    %248 = vst [vmem:[%s5 + $0x20] sm:$0xff] %v232
    %249 = vst [vmem:[%s5 + $0x28] sm:$0xff] %v233
    %250 = vst [vmem:[%s5 + $0x30] sm:$0xff] %v234
    %251 = vst [vmem:[%s5 + $0x38] sm:$0xff] %v235
    %252 = vst [vmem:[%s5 + $0x40] sm:$0xff] %v236
    %253 = vst [vmem:[%s5 + $0x48] sm:$0xff] %v237
    %254 = vst [vmem:[%s5 + $0x50] sm:$0xff] %v238
    %255 = vst [vmem:[%s5 + $0x58] sm:$0xff] %v239
    %256 = vst [vmem:[%s5 + $0x60] sm:$0xff] %v240
    %257 = vst [vmem:[%s5 + $0x68] sm:$0xff] %v241
    %258 = vst [vmem:[%s5 + $0x70] sm:$0xff] %v242
    %259 = vst [vmem:[%s5 + $0x78] sm:$0xff] %v243
    %s260 = scalar_lea.vmem %s0, 128
    %v261 = vld [vmem:[%s260] sm:$0xff]
    %v262 = vld [vmem:[%s260 + $0x8] sm:$0xff]
    %v263 = vld [vmem:[%s260 + $0x10] sm:$0xff]
    %v264 = vld [vmem:[%s260 + $0x18] sm:$0xff]
    %v265 = vld [vmem:[%s260 + $0x20] sm:$0xff]
    %v266 = vld [vmem:[%s260 + $0x28] sm:$0xff]
    %v267 = vld [vmem:[%s260 + $0x30] sm:$0xff]
    %v268 = vld [vmem:[%s260 + $0x38] sm:$0xff]
    %v269 = vld [vmem:[%s260 + $0x40] sm:$0xff]
    %v270 = vld [vmem:[%s260 + $0x48] sm:$0xff]
    %v271 = vld [vmem:[%s260 + $0x50] sm:$0xff]
    %v272 = vld [vmem:[%s260 + $0x58] sm:$0xff]
    %v273 = vld [vmem:[%s260 + $0x60] sm:$0xff]
    %v274 = vld [vmem:[%s260 + $0x68] sm:$0xff]
    %v275 = vld [vmem:[%s260 + $0x70] sm:$0xff]
    %v276 = vld [vmem:[%s260 + $0x78] sm:$0xff]
    %v277 = vadd.f32 %v261, %v262
    %v278 = vadd.f32 %v277, %v263
    %v279 = vadd.f32 %v278, %v264
    %v280 = vadd.f32 %v279, %v265
    %v281 = vadd.f32 %v280, %v266
    %v282 = vadd.f32 %v281, %v267
    %v283 = vadd.f32 %v282, %v268
    %v284 = vadd.f32 %v283, %v269
    %v285 = vadd.f32 %v284, %v270
    %v286 = vadd.f32 %v285, %v271
    %v287 = vadd.f32 %v286, %v272
    %v288 = vadd.f32 %v287, %v273
    %v289 = vadd.f32 %v288, %v274
    %v290 = vadd.f32 %v289, %v275
    %v291 = vadd.f32 %v290, %v276
    %v292 = vrot.slane %v291, 4
    %v293 = vadd.f32 %v291, %v292
    %v294 = vrot.slane %v293, 2
    %v295 = vadd.f32 %v293, %v294
    %v296 = vrot.slane %v295, 1
    %v297 = vadd.f32 %v295, %v296
    %299 = vrot.lane.b32.xlu0 %v297, 64
    %v300 = vpop.permute.xlu0 %299
    %v302 = vadd.f32 %v297, %v300
    %v303 = vmul.f32 %v302, 0.00390625
    %v304 = vmax.f32 %v261, %v265
    %v305 = vmax.f32 %v262, %v266
    %v306 = vmax.f32 %v263, %v267
    %v307 = vmax.f32 %v264, %v268
    %v308 = vmax.f32 %v304, %v269
    %v309 = vmax.f32 %v305, %v270
    %v310 = vmax.f32 %v306, %v271
    %v311 = vmax.f32 %v307, %v272
    %v312 = vmax.f32 %v308, %v273
    %v313 = vmax.f32 %v309, %v274
    %v314 = vmax.f32 %v310, %v275
    %v315 = vmax.f32 %v311, %v276
    %v316 = vmax.f32 %v312, %v313
    %v317 = vmax.f32 %v314, %v315
    %v318 = vmax.f32 %v316, %v317
    %v319 = vrot.slane %v318, 4
    %v320 = vmax.f32 %v318, %v319
    %v321 = vrot.slane %v320, 2
    %v322 = vmax.f32 %v320, %v321
    %v323 = vrot.slane %v322, 1
    %v324 = vmax.f32 %v322, %v323
    %326 = vrot.lane.b32.xlu0 %v324, 64
    %v327 = vpop.permute.xlu0 %326
    %v329 = vmax.f32 %v324, %v327
    %v331 = vrot.slane %v329, 7
    %v333 = vsel %vm105, %v303, %v331
    %v334 = vld [vmem:[%s4] sm:$0x1]
    %v335 = vld [vmem:[%s1] sm:$0x1]
    %v336 = vperm.slane %v335, 0
    %v337 = vmul.f32 %v333, %v336
    %v338 = vsel %vm111, %v337, 0.0
    %339 = vadd.xlane.f32.xlu0 %v338
    %v340 = vpop.xlane.xlu0 %339
    %s341 = sld [smem:[#allocation2]]
    %v342 = vstv %s341
    %v343 = vadd.f32 %v340, %v342
    %v344 = vmax.f32 %v343, 0.0
    %v346 = vrot.slane %v344, 1
    %v348 = vadd.f32 %v344, %v346
    %v349 = vld [vmem:[%s3] sm:$0x1]
    %351 = vset.pattern.permute.xlu0 0
    %352 = vperm.xlu0 %351, %v348
    %v353 = vpop.permute.xlu0 %352
    %v355 = vmul.f32 %v353, %v349
    %v356 = vadd.f32 %v334, %v355
    %v357 = vld [vmem:[%s1 + $0x1] sm:$0x1]
    %v358 = vperm.slane %v357, 0
    %v359 = vmul.f32 %v333, %v358
    %v360 = vsel %vm111, %v359, 0.0
    %361 = vadd.xlane.f32.xlu0 %v360
    %v362 = vpop.xlane.xlu0 %361
    %s363 = sld [smem:[#allocation2 + $0x1]]
    %v364 = vstv %s363
    %v365 = vadd.f32 %v362, %v364
    %v366 = vmax.f32 %v365, 0.0
    %v368 = vrot.slane %v366, 1
    %v370 = vadd.f32 %v366, %v368
    %v371 = vld [vmem:[%s3 + $0x1] sm:$0x1]
    %373 = vset.pattern.permute.xlu0 0
    %374 = vperm.xlu0 %373, %v370
    %v375 = vpop.permute.xlu0 %374
    %v377 = vmul.f32 %v375, %v371
    %v378 = vadd.f32 %v356, %v377
    %v379 = vld [vmem:[%s1 + $0x2] sm:$0x1]
    %v380 = vperm.slane %v379, 0
    %v381 = vmul.f32 %v333, %v380
    %v382 = vsel %vm111, %v381, 0.0
    %383 = vadd.xlane.f32.xlu0 %v382
    %v384 = vpop.xlane.xlu0 %383
    %s385 = sld [smem:[#allocation2 + $0x2]]
    %v386 = vstv %s385
    %v387 = vadd.f32 %v384, %v386
    %v388 = vmax.f32 %v387, 0.0
    %v390 = vrot.slane %v388, 1
    %v392 = vadd.f32 %v388, %v390
    %v393 = vld [vmem:[%s3 + $0x2] sm:$0x1]
    %395 = vset.pattern.permute.xlu0 0
    %396 = vperm.xlu0 %395, %v392
    %v397 = vpop.permute.xlu0 %396
    %v399 = vmul.f32 %v397, %v393
    %v400 = vadd.f32 %v378, %v399
    %v401 = vld [vmem:[%s1 + $0x3] sm:$0x1]
    %v402 = vperm.slane %v401, 0
    %v403 = vmul.f32 %v333, %v402
    %v404 = vsel %vm111, %v403, 0.0
    %405 = vadd.xlane.f32.xlu0 %v404
    %v406 = vpop.xlane.xlu0 %405
    %s407 = sld [smem:[#allocation2 + $0x3]]
    %v408 = vstv %s407
    %v409 = vadd.f32 %v406, %v408
    %v410 = vmax.f32 %v409, 0.0
    %v412 = vrot.slane %v410, 1
    %v414 = vadd.f32 %v410, %v412
    %v415 = vld [vmem:[%s3 + $0x3] sm:$0x1]
    %417 = vset.pattern.permute.xlu0 0
    %418 = vperm.xlu0 %417, %v414
    %v419 = vpop.permute.xlu0 %418
    %v421 = vmul.f32 %v419, %v415
    %v422 = vadd.f32 %v400, %v421
    %v423 = vand.u32 2147483647, %v422
    %v424 = vsub.f32 0.0, %v423
    %v425 = vmul.f32 %v424, 1.442695
    %v426 = vpow.pop %v425
    %vm427 = vcmp.ge.f32.partialorder %v422, 0.0
    %v428 = vadd.f32 %v426, 1.0
    %v429 = vrcp.pop %v428
    %v430 = vmul.f32 %v428, %v429
    %v431 = vsub.f32 1.0, %v430
    %v432 = vmul.f32 %v429, %v431
    %v433 = vadd.f32 %v429, %v432
    %vm434 = vweird.f32 %v428
    %vm435 = vweird.f32 %v429
    %vm436 = vmor %vm434, %vm435
    %v437 = vsel %vm436, %v429, %v433
    %v438 = vand.u32 2147483647, %v428
    %vm439 = vcmp.eq.f32.partialorder %v438, 8.507059e+37
    %v440 = vand.u32 %v428, 2147483648
    %v441 = vor.u32 1.1754944e-38, %v440
    %v442 = vsel %vm439, %v441, %v437
    %v443 = vmul.f32 1.0, %v442
    %v444 = vmul.f32 %v426, %v442
    %v445 = vsel %vm427, %v443, %v444
    %v447 = vperm.slane %v445, 0
    %448 = vrot.lane.b32.xlu0 %v447, 64
    %v449 = vpop.permute.xlu0 %448
    %v451 = vsel %vm225, %v445, %v449
    %v452 = vperm.slane %v451, 0
    %v453 = vmul.f32 %v261, %v452
    %v454 = vmul.f32 %v262, %v452
    %v455 = vmul.f32 %v263, %v452
    %v456 = vmul.f32 %v264, %v452
    %v457 = vmul.f32 %v265, %v452
    %v458 = vmul.f32 %v266, %v452
    %v459 = vmul.f32 %v267, %v452
    %v460 = vmul.f32 %v268, %v452
    %v461 = vmul.f32 %v269, %v452
    %v462 = vmul.f32 %v270, %v452
    %v463 = vmul.f32 %v271, %v452
    %v464 = vmul.f32 %v272, %v452
    %v465 = vmul.f32 %v273, %v452
    %v466 = vmul.f32 %v274, %v452
    %v467 = vmul.f32 %v275, %v452
    %v468 = vmul.f32 %v276, %v452
    %s469 = scalar_lea.vmem %s5, 128
    %470 = vst [vmem:[%s469] sm:$0xff] %v453
    %471 = vst [vmem:[%s469 + $0x8] sm:$0xff] %v454
    %472 = vst [vmem:[%s469 + $0x10] sm:$0xff] %v455
    %473 = vst [vmem:[%s469 + $0x18] sm:$0xff] %v456
    %474 = vst [vmem:[%s469 + $0x20] sm:$0xff] %v457
    %475 = vst [vmem:[%s469 + $0x28] sm:$0xff] %v458
    %476 = vst [vmem:[%s469 + $0x30] sm:$0xff] %v459
    %477 = vst [vmem:[%s469 + $0x38] sm:$0xff] %v460
    %478 = vst [vmem:[%s469 + $0x40] sm:$0xff] %v461
    %479 = vst [vmem:[%s469 + $0x48] sm:$0xff] %v462
    %480 = vst [vmem:[%s469 + $0x50] sm:$0xff] %v463
    %481 = vst [vmem:[%s469 + $0x58] sm:$0xff] %v464
    %482 = vst [vmem:[%s469 + $0x60] sm:$0xff] %v465
    %483 = vst [vmem:[%s469 + $0x68] sm:$0xff] %v466
    %484 = vst [vmem:[%s469 + $0x70] sm:$0xff] %v467
    %485 = vst [vmem:[%s469 + $0x78] sm:$0xff] %v468
    // Predicated region
    $region26: #{channel_gate_forward.1} parent=1 // pred_check
      _
    $region27: #{channel_gate_forward.1} parent=1 // pred_check_branch
      %487 = sbr.rel (0) target = $region29
    $region28: #{channel_gate_forward.1} parent=1 // pred_region
      _
    $region29: #{channel_gate_forward.1} parent=1 // pred_fallthru
      _
    // Predicated region
    $region30: #{channel_gate_forward.1} parent=1 // pred_check
      _
    $region31: #{channel_gate_forward.1} parent=1 // pred_check_branch
      %489 = sbr.rel (0) target = $region33
    $region32: #{channel_gate_forward.1} parent=1 // pred_region
      _
    $region33: #{channel_gate_forward.1} parent=1 // pred_fallthru
      _
    %490 = vsyncpa [#allocation3], 1

</llo_original>
